<compile_context>
chip_gen: v7x
topology: tpu7x:2x2x1
jax: 0.10.0
libtpu: 0.0.40
codegen_flags: <defaults>
</compile_context>

<pallas_src>
import jax
import jax.numpy as jnp
from jax import lax
from jax.experimental import pallas as pl
from jax.experimental.pallas import tpu as pltpu


def _round_up(x, m):
    return (x + m - 1) // m * m


def _col_to_row(col, n):
    """(n, 1) -> (1, n) using broadcast + diagonal select + sublane reduce.

    Avoids depending on Mosaic's sublane->lane relayout for a (n,1)->(1,n) reshape; every op
    here (2-D iota, where/select, cross-sublane sum) is a vanilla VPU/XLU lowering.
    """
    ii = lax.broadcasted_iota(jnp.int32, (n, n), 0)
    jj = lax.broadcasted_iota(jnp.int32, (n, n), 1)
    diag = jnp.where(ii == jj, jnp.broadcast_to(col, (n, n)), 0.0)
    return jnp.sum(diag, axis=0, keepdims=True)


def simple_model_forward(user_idx, movie_idx, user_table, movie_table, weight, bias):
    """user_idx/movie_idx: (B,) int; tables: (N, E); weight: (1, 2E); bias: (1,).

    Returns the torch-style `.squeeze()` of the (B, 1) prediction: (B,) for B > 1, scalar
    for B == 1.
    """
    B = int(user_idx.shape[0])
    NU, E = user_table.shape
    NM, E2 = movie_table.shape
    assert E2 == E and weight.shape == (1, 2 * E) and bias.shape == (1,)

    # Lane-align the embedding width; batch tile >= 128 rows for production B, exact tile
    # (rounded to 8 sublanes) for tiny B so the demo does no useless work.
    E_pad = _round_up(E, 128)
    TB = min(128, _round_up(B, 8))
    num_tiles = pl.cdiv(B, TB)
    B_pad = num_tiles * TB

    # VMEM-residency gate: each (1, E_pad) table row occupies an (8, E_pad) tile in VMEM.
    itemsize = jnp.dtype(user_table.dtype).itemsize
    table_vmem_bytes = (NU + NM) * 8 * E_pad * itemsize
    if table_vmem_bytes > 20 * 1024 * 1024:
        # TODO(synk): scalar-prefetch HBM row-gather fallback for very large catalogs.
        raise NotImplementedError("embedding tables too large for the VMEM-resident path")

    # --- wrapper-side prep (no full-table dtype casts; padding keeps native dtype) ---------
    uidx = jnp.pad(user_idx.astype(jnp.int32), (0, B_pad - B))
    midx = jnp.pad(movie_idx.astype(jnp.int32), (0, B_pad - B))
    utab = jnp.pad(user_table, ((0, 0), (0, E_pad - E))).reshape(NU, 1, E_pad)
    mtab = jnp.pad(movie_table, ((0, 0), (0, E_pad - E))).reshape(NM, 1, E_pad)
    w = weight.astype(jnp.float32)
    wu = jnp.pad(w[:, :E], ((0, 0), (0, E_pad - E)))      # (1, E_pad)
    wm = jnp.pad(w[:, E:], ((0, 0), (0, E_pad - E)))      # (1, E_pad)
    b = bias.astype(jnp.float32).reshape(1)

    def kernel(uidx_ref, midx_ref, utab_ref, mtab_ref, wu_ref, wm_ref, b_ref,
               out_ref, u_scr, m_scr):
        base = pl.program_id(0) * TB

        # In-VMEM gather of this tile's rows. Table index is a dynamic *leading* (untiled)
        # dim; scratch row offsets are static (fully unrolled), so every VMEM access is a
        # plain aligned row load/store.
        for k in range(TB):
            u = uidx_ref[base + k]
            v = midx_ref[base + k]
            u_scr[pl.ds(k, 1), :] = utab_ref[u]
            m_scr[pl.ds(k, 1), :] = mtab_ref[v]

        # Linear(2E, 1): cat([u, m]) @ W.T + b == sum(u*Wu) + sum(m*Wm) + b.
        # VPU multiply with the (1, E_pad) weight rows broadcast once, XLU row-reduce.
        prod = (u_scr[...].astype(jnp.float32) * wu_ref[...]
                + m_scr[...].astype(jnp.float32) * wm_ref[...])          # (TB, E_pad)
        col = jnp.sum(prod, axis=-1, keepdims=True) + b_ref[0]           # (TB, 1)

        # Lane-dense per-tile output block -> unmasked wide store, contiguous writeback.
        out_ref[...] = _col_to_row(col, TB)                              # (1, TB)

    smem = pltpu.MemorySpace.SMEM
    grid_spec = pltpu.PrefetchScalarGridSpec(
        num_scalar_prefetch=0,
        grid=(num_tiles,),
        in_specs=[
            pl.BlockSpec(memory_space=smem),                    # user indices (B_pad,)
            pl.BlockSpec(memory_space=smem),                    # movie indices (B_pad,)
            pl.BlockSpec((NU, 1, E_pad), lambda t: (0, 0, 0)),  # user table, VMEM-resident
            pl.BlockSpec((NM, 1, E_pad), lambda t: (0, 0, 0)),  # movie table, VMEM-resident
            pl.BlockSpec((1, E_pad), lambda t: (0, 0)),         # W[:, :E]
            pl.BlockSpec((1, E_pad), lambda t: (0, 0)),         # W[:, E:]
            pl.BlockSpec(memory_space=smem),                    # bias (1,)
        ],
        out_specs=pl.BlockSpec((1, TB), lambda t: (0, t)),      # per-tile lane-dense block
        scratch_shapes=[
            pltpu.VMEM((TB, E_pad), user_table.dtype),
            pltpu.VMEM((TB, E_pad), movie_table.dtype),
        ],
    )

    out = pl.pallas_call(
        kernel,
        out_shape=jax.ShapeDtypeStruct((1, B_pad), jnp.float32),
        grid_spec=grid_spec,
        compiler_params=pltpu.CompilerParams(
            # Per-tile output blocks + read-only shared tables -> batch tiles are independent,
            # so v7x can shard them across both TensorCores. Default VMEM limit is plenty
            # (table residency is gated above), so vmem_limit_bytes is left unset.
            dimension_semantics=("parallel",)),
    )(uidx, midx, utab, mtab, wu, wm, b)

    # torch .squeeze(): (B, 1) -> (B,) for B > 1, scalar for B == 1.
    return jnp.squeeze(out[0, :B])


if __name__ == "__main__":
    NUM_USERS = 16
    NUM_MOVIES = 24
    EMB = 50          # embedding_size default from the module
    B = 8

    key = jax.random.PRNGKey(0)
    k_u, k_m, k_w, k_b, k_iu, k_im = jax.random.split(key, 6)

    # Deterministic synthetic parameters (not a checkpoint load).
    user_table = jax.random.normal(k_u, (NUM_USERS, EMB), dtype=jnp.float32)
    movie_table = jax.random.normal(k_m, (NUM_MOVIES, EMB), dtype=jnp.float32)
    weight = jax.random.normal(k_w, (1, 2 * EMB), dtype=jnp.float32) * 0.1  # nn.Linear weight
    bias = jax.random.normal(k_b, (1,), dtype=jnp.float32) * 0.1            # nn.Linear bias

    user_idx = jax.random.randint(k_iu, (B,), 0, NUM_USERS, dtype=jnp.int32)
    movie_idx = jax.random.randint(k_im, (B,), 0, NUM_MOVIES, dtype=jnp.int32)

    pred = simple_model_forward(user_idx, movie_idx, user_table, movie_table, weight, bias)
    pred = jax.block_until_ready(pred)

    # Pure-JAX reference (embedding gather + concat + linear + squeeze).
    u_ref = user_table[user_idx]
    m_ref = movie_table[movie_idx]
    ref = jnp.squeeze(jnp.concatenate([u_ref, m_ref], axis=1) @ weight.T + bias)

    assert pred.shape == (B,)
    assert jnp.allclose(pred, ref, atol=1e-3, rtol=1e-3), (pred, ref)
    print("KERNEL_OK")
</pallas_src>

<mosaic_0001>
module attributes {stable_mosaic.version = 11 : i64} {
  func.func @kernel(%arg0: i32, %arg1: memref<8xi32, #tpu.memory_space<smem>>, %arg2: memref<8xi32, #tpu.memory_space<smem>>, %arg3: memref<16x1x128xf32, #tpu.memory_space<vmem>>, %arg4: memref<24x1x128xf32, #tpu.memory_space<vmem>>, %arg5: memref<1x128xf32, #tpu.memory_space<vmem>>, %arg6: memref<1x128xf32, #tpu.memory_space<vmem>>, %arg7: memref<1xf32, #tpu.memory_space<smem>>, %arg8: memref<1x8xf32, #tpu.memory_space<vmem>>, %arg9: memref<8x128xf32, #tpu.memory_space<vmem>>, %arg10: memref<8x128xf32, #tpu.memory_space<vmem>>) attributes {dimension_semantics = [#tpu.dimension_semantics<parallel>], iteration_bounds = array<i64: 1>, scalar_prefetch = 0 : i64, scratch_operands = 2 : i64, tpu.core_type = #tpu.core_type<tc>, window_params = [{transform_indices = @transform_0, window_bounds = array<i64: 8>}, {transform_indices = @transform_1, window_bounds = array<i64: 8>}, {pipeline_mode = #tpu.pipeline_mode<synchronous>, transform_indices = @transform_2, window_bounds = array<i64: 16, 1, 128>}, {pipeline_mode = #tpu.pipeline_mode<synchronous>, transform_indices = @transform_3, window_bounds = array<i64: 24, 1, 128>}, {pipeline_mode = #tpu.pipeline_mode<synchronous>, transform_indices = @transform_4, window_bounds = array<i64: 1, 128>}, {pipeline_mode = #tpu.pipeline_mode<synchronous>, transform_indices = @transform_5, window_bounds = array<i64: 1, 128>}, {transform_indices = @transform_6, window_bounds = array<i64: 1>}, {transform_indices = @transform_7, window_bounds = array<i64: 1, 8>}]} {
    %c8_i32 = arith.constant 8 : i32
    %0 = arith.muli %arg0, %c8_i32 : i32
    %c0_i32 = arith.constant 0 : i32
    %1 = arith.addi %0, %c0_i32 : i32
    %2 = arith.index_cast %1 : i32 to index
    %3 = memref.load %arg1[%2] : memref<8xi32, #tpu.memory_space<smem>>
    %c0_i32_0 = arith.constant 0 : i32
    %4 = arith.addi %0, %c0_i32_0 : i32
    %5 = arith.index_cast %4 : i32 to index
    %6 = memref.load %arg2[%5] : memref<8xi32, #tpu.memory_space<smem>>
    %7 = arith.index_cast %3 : i32 to index
    %c0 = arith.constant 0 : index
    %c0_1 = arith.constant 0 : index
    %8 = vector.load %arg3[%7, %c0, %c0_1] : memref<16x1x128xf32, #tpu.memory_space<vmem>>, vector<1x1x128xf32>
    %9 = vector.shape_cast %8 : vector<1x1x128xf32> to vector<1x128xf32>
    %c0_2 = arith.constant 0 : index
    %c0_3 = arith.constant 0 : index
    %10 = vector.load %arg9[%c0_2, %c0_3] : memref<8x128xf32, #tpu.memory_space<vmem>>, vector<1x128xf32>
    tpu.vector_store %arg9[%c0_2, %c0_3], %9 {strides = array<i32>} : memref<8x128xf32, #tpu.memory_space<vmem>>, vector<1x128xf32>,
    %11 = arith.index_cast %6 : i32 to index
    %c0_4 = arith.constant 0 : index
    %c0_5 = arith.constant 0 : index
    %12 = vector.load %arg4[%11, %c0_4, %c0_5] : memref<24x1x128xf32, #tpu.memory_space<vmem>>, vector<1x1x128xf32>
    %13 = vector.shape_cast %12 : vector<1x1x128xf32> to vector<1x128xf32>
    %c0_6 = arith.constant 0 : index
    %c0_7 = arith.constant 0 : index
    %14 = vector.load %arg10[%c0_6, %c0_7] : memref<8x128xf32, #tpu.memory_space<vmem>>, vector<1x128xf32>
    tpu.vector_store %arg10[%c0_6, %c0_7], %13 {strides = array<i32>} : memref<8x128xf32, #tpu.memory_space<vmem>>, vector<1x128xf32>,
    %c1_i32 = arith.constant 1 : i32
    %15 = arith.addi %0, %c1_i32 : i32
    %16 = arith.index_cast %15 : i32 to index
    %17 = memref.load %arg1[%16] : memref<8xi32, #tpu.memory_space<smem>>
    %c1_i32_8 = arith.constant 1 : i32
    %18 = arith.addi %0, %c1_i32_8 : i32
    %19 = arith.index_cast %18 : i32 to index
    %20 = memref.load %arg2[%19] : memref<8xi32, #tpu.memory_space<smem>>
    %21 = arith.index_cast %17 : i32 to index
    %c0_9 = arith.constant 0 : index
    %c0_10 = arith.constant 0 : index
    %22 = vector.load %arg3[%21, %c0_9, %c0_10] : memref<16x1x128xf32, #tpu.memory_space<vmem>>, vector<1x1x128xf32>
    %23 = vector.shape_cast %22 : vector<1x1x128xf32> to vector<1x128xf32>
    %c1 = arith.constant 1 : index
    %c0_11 = arith.constant 0 : index
    %24 = vector.load %arg9[%c1, %c0_11] : memref<8x128xf32, #tpu.memory_space<vmem>>, vector<1x128xf32>
    tpu.vector_store %arg9[%c1, %c0_11], %23 {strides = array<i32>} : memref<8x128xf32, #tpu.memory_space<vmem>>, vector<1x128xf32>,
    %25 = arith.index_cast %20 : i32 to index
    %c0_12 = arith.constant 0 : index
    %c0_13 = arith.constant 0 : index
    %26 = vector.load %arg4[%25, %c0_12, %c0_13] : memref<24x1x128xf32, #tpu.memory_space<vmem>>, vector<1x1x128xf32>
    %27 = vector.shape_cast %26 : vector<1x1x128xf32> to vector<1x128xf32>
    %c1_14 = arith.constant 1 : index
    %c0_15 = arith.constant 0 : index
    %28 = vector.load %arg10[%c1_14, %c0_15] : memref<8x128xf32, #tpu.memory_space<vmem>>, vector<1x128xf32>
    tpu.vector_store %arg10[%c1_14, %c0_15], %27 {strides = array<i32>} : memref<8x128xf32, #tpu.memory_space<vmem>>, vector<1x128xf32>,
    %c2_i32 = arith.constant 2 : i32
    %29 = arith.addi %0, %c2_i32 : i32
    %30 = arith.index_cast %29 : i32 to index
    %31 = memref.load %arg1[%30] : memref<8xi32, #tpu.memory_space<smem>>
    %c2_i32_16 = arith.constant 2 : i32
    %32 = arith.addi %0, %c2_i32_16 : i32
    %33 = arith.index_cast %32 : i32 to index
    %34 = memref.load %arg2[%33] : memref<8xi32, #tpu.memory_space<smem>>
    %35 = arith.index_cast %31 : i32 to index
    %c0_17 = arith.constant 0 : index
    %c0_18 = arith.constant 0 : index
    %36 = vector.load %arg3[%35, %c0_17, %c0_18] : memref<16x1x128xf32, #tpu.memory_space<vmem>>, vector<1x1x128xf32>
    %37 = vector.shape_cast %36 : vector<1x1x128xf32> to vector<1x128xf32>
    %c2 = arith.constant 2 : index
    %c0_19 = arith.constant 0 : index
    %38 = vector.load %arg9[%c2, %c0_19] : memref<8x128xf32, #tpu.memory_space<vmem>>, vector<1x128xf32>
    tpu.vector_store %arg9[%c2, %c0_19], %37 {strides = array<i32>} : memref<8x128xf32, #tpu.memory_space<vmem>>, vector<1x128xf32>,
    %39 = arith.index_cast %34 : i32 to index
    %c0_20 = arith.constant 0 : index
    %c0_21 = arith.constant 0 : index
    %40 = vector.load %arg4[%39, %c0_20, %c0_21] : memref<24x1x128xf32, #tpu.memory_space<vmem>>, vector<1x1x128xf32>
    %41 = vector.shape_cast %40 : vector<1x1x128xf32> to vector<1x128xf32>
    %c2_22 = arith.constant 2 : index
    %c0_23 = arith.constant 0 : index
    %42 = vector.load %arg10[%c2_22, %c0_23] : memref<8x128xf32, #tpu.memory_space<vmem>>, vector<1x128xf32>
    tpu.vector_store %arg10[%c2_22, %c0_23], %41 {strides = array<i32>} : memref<8x128xf32, #tpu.memory_space<vmem>>, vector<1x128xf32>,
    %c3_i32 = arith.constant 3 : i32
    %43 = arith.addi %0, %c3_i32 : i32
    %44 = arith.index_cast %43 : i32 to index
    %45 = memref.load %arg1[%44] : memref<8xi32, #tpu.memory_space<smem>>
    %c3_i32_24 = arith.constant 3 : i32
    %46 = arith.addi %0, %c3_i32_24 : i32
    %47 = arith.index_cast %46 : i32 to index
    %48 = memref.load %arg2[%47] : memref<8xi32, #tpu.memory_space<smem>>
    %49 = arith.index_cast %45 : i32 to index
    %c0_25 = arith.constant 0 : index
    %c0_26 = arith.constant 0 : index
    %50 = vector.load %arg3[%49, %c0_25, %c0_26] : memref<16x1x128xf32, #tpu.memory_space<vmem>>, vector<1x1x128xf32>
    %51 = vector.shape_cast %50 : vector<1x1x128xf32> to vector<1x128xf32>
    %c3 = arith.constant 3 : index
    %c0_27 = arith.constant 0 : index
    %52 = vector.load %arg9[%c3, %c0_27] : memref<8x128xf32, #tpu.memory_space<vmem>>, vector<1x128xf32>
    tpu.vector_store %arg9[%c3, %c0_27], %51 {strides = array<i32>} : memref<8x128xf32, #tpu.memory_space<vmem>>, vector<1x128xf32>,
    %53 = arith.index_cast %48 : i32 to index
    %c0_28 = arith.constant 0 : index
    %c0_29 = arith.constant 0 : index
    %54 = vector.load %arg4[%53, %c0_28, %c0_29] : memref<24x1x128xf32, #tpu.memory_space<vmem>>, vector<1x1x128xf32>
    %55 = vector.shape_cast %54 : vector<1x1x128xf32> to vector<1x128xf32>
    %c3_30 = arith.constant 3 : index
    %c0_31 = arith.constant 0 : index
    %56 = vector.load %arg10[%c3_30, %c0_31] : memref<8x128xf32, #tpu.memory_space<vmem>>, vector<1x128xf32>
    tpu.vector_store %arg10[%c3_30, %c0_31], %55 {strides = array<i32>} : memref<8x128xf32, #tpu.memory_space<vmem>>, vector<1x128xf32>,
    %c4_i32 = arith.constant 4 : i32
    %57 = arith.addi %0, %c4_i32 : i32
    %58 = arith.index_cast %57 : i32 to index
    %59 = memref.load %arg1[%58] : memref<8xi32, #tpu.memory_space<smem>>
    %c4_i32_32 = arith.constant 4 : i32
    %60 = arith.addi %0, %c4_i32_32 : i32
    %61 = arith.index_cast %60 : i32 to index
    %62 = memref.load %arg2[%61] : memref<8xi32, #tpu.memory_space<smem>>
    %63 = arith.index_cast %59 : i32 to index
    %c0_33 = arith.constant 0 : index
    %c0_34 = arith.constant 0 : index
    %64 = vector.load %arg3[%63, %c0_33, %c0_34] : memref<16x1x128xf32, #tpu.memory_space<vmem>>, vector<1x1x128xf32>
    %65 = vector.shape_cast %64 : vector<1x1x128xf32> to vector<1x128xf32>
    %c4 = arith.constant 4 : index
    %c0_35 = arith.constant 0 : index
    %66 = vector.load %arg9[%c4, %c0_35] : memref<8x128xf32, #tpu.memory_space<vmem>>, vector<1x128xf32>
    tpu.vector_store %arg9[%c4, %c0_35], %65 {strides = array<i32>} : memref<8x128xf32, #tpu.memory_space<vmem>>, vector<1x128xf32>,
    %67 = arith.index_cast %62 : i32 to index
    %c0_36 = arith.constant 0 : index
    %c0_37 = arith.constant 0 : index
    %68 = vector.load %arg4[%67, %c0_36, %c0_37] : memref<24x1x128xf32, #tpu.memory_space<vmem>>, vector<1x1x128xf32>
    %69 = vector.shape_cast %68 : vector<1x1x128xf32> to vector<1x128xf32>
    %c4_38 = arith.constant 4 : index
    %c0_39 = arith.constant 0 : index
    %70 = vector.load %arg10[%c4_38, %c0_39] : memref<8x128xf32, #tpu.memory_space<vmem>>, vector<1x128xf32>
    tpu.vector_store %arg10[%c4_38, %c0_39], %69 {strides = array<i32>} : memref<8x128xf32, #tpu.memory_space<vmem>>, vector<1x128xf32>,
    %c5_i32 = arith.constant 5 : i32
    %71 = arith.addi %0, %c5_i32 : i32
    %72 = arith.index_cast %71 : i32 to index
    %73 = memref.load %arg1[%72] : memref<8xi32, #tpu.memory_space<smem>>
    %c5_i32_40 = arith.constant 5 : i32
    %74 = arith.addi %0, %c5_i32_40 : i32
    %75 = arith.index_cast %74 : i32 to index
    %76 = memref.load %arg2[%75] : memref<8xi32, #tpu.memory_space<smem>>
    %77 = arith.index_cast %73 : i32 to index
    %c0_41 = arith.constant 0 : index
    %c0_42 = arith.constant 0 : index
    %78 = vector.load %arg3[%77, %c0_41, %c0_42] : memref<16x1x128xf32, #tpu.memory_space<vmem>>, vector<1x1x128xf32>
    %79 = vector.shape_cast %78 : vector<1x1x128xf32> to vector<1x128xf32>
    %c5 = arith.constant 5 : index
    %c0_43 = arith.constant 0 : index
    %80 = vector.load %arg9[%c5, %c0_43] : memref<8x128xf32, #tpu.memory_space<vmem>>, vector<1x128xf32>
    tpu.vector_store %arg9[%c5, %c0_43], %79 {strides = array<i32>} : memref<8x128xf32, #tpu.memory_space<vmem>>, vector<1x128xf32>,
    %81 = arith.index_cast %76 : i32 to index
    %c0_44 = arith.constant 0 : index
    %c0_45 = arith.constant 0 : index
    %82 = vector.load %arg4[%81, %c0_44, %c0_45] : memref<24x1x128xf32, #tpu.memory_space<vmem>>, vector<1x1x128xf32>
    %83 = vector.shape_cast %82 : vector<1x1x128xf32> to vector<1x128xf32>
    %c5_46 = arith.constant 5 : index
    %c0_47 = arith.constant 0 : index
    %84 = vector.load %arg10[%c5_46, %c0_47] : memref<8x128xf32, #tpu.memory_space<vmem>>, vector<1x128xf32>
    tpu.vector_store %arg10[%c5_46, %c0_47], %83 {strides = array<i32>} : memref<8x128xf32, #tpu.memory_space<vmem>>, vector<1x128xf32>,
    %c6_i32 = arith.constant 6 : i32
    %85 = arith.addi %0, %c6_i32 : i32
    %86 = arith.index_cast %85 : i32 to index
    %87 = memref.load %arg1[%86] : memref<8xi32, #tpu.memory_space<smem>>
    %c6_i32_48 = arith.constant 6 : i32
    %88 = arith.addi %0, %c6_i32_48 : i32
    %89 = arith.index_cast %88 : i32 to index
    %90 = memref.load %arg2[%89] : memref<8xi32, #tpu.memory_space<smem>>
    %91 = arith.index_cast %87 : i32 to index
    %c0_49 = arith.constant 0 : index
    %c0_50 = arith.constant 0 : index
    %92 = vector.load %arg3[%91, %c0_49, %c0_50] : memref<16x1x128xf32, #tpu.memory_space<vmem>>, vector<1x1x128xf32>
    %93 = vector.shape_cast %92 : vector<1x1x128xf32> to vector<1x128xf32>
    %c6 = arith.constant 6 : index
    %c0_51 = arith.constant 0 : index
    %94 = vector.load %arg9[%c6, %c0_51] : memref<8x128xf32, #tpu.memory_space<vmem>>, vector<1x128xf32>
    tpu.vector_store %arg9[%c6, %c0_51], %93 {strides = array<i32>} : memref<8x128xf32, #tpu.memory_space<vmem>>, vector<1x128xf32>,
    %95 = arith.index_cast %90 : i32 to index
    %c0_52 = arith.constant 0 : index
    %c0_53 = arith.constant 0 : index
    %96 = vector.load %arg4[%95, %c0_52, %c0_53] : memref<24x1x128xf32, #tpu.memory_space<vmem>>, vector<1x1x128xf32>
    %97 = vector.shape_cast %96 : vector<1x1x128xf32> to vector<1x128xf32>
    %c6_54 = arith.constant 6 : index
    %c0_55 = arith.constant 0 : index
    %98 = vector.load %arg10[%c6_54, %c0_55] : memref<8x128xf32, #tpu.memory_space<vmem>>, vector<1x128xf32>
    tpu.vector_store %arg10[%c6_54, %c0_55], %97 {strides = array<i32>} : memref<8x128xf32, #tpu.memory_space<vmem>>, vector<1x128xf32>,
    %c7_i32 = arith.constant 7 : i32
    %99 = arith.addi %0, %c7_i32 : i32
    %100 = arith.index_cast %99 : i32 to index
    %101 = memref.load %arg1[%100] : memref<8xi32, #tpu.memory_space<smem>>
    %c7_i32_56 = arith.constant 7 : i32
    %102 = arith.addi %0, %c7_i32_56 : i32
    %103 = arith.index_cast %102 : i32 to index
    %104 = memref.load %arg2[%103] : memref<8xi32, #tpu.memory_space<smem>>
    %105 = arith.index_cast %101 : i32 to index
    %c0_57 = arith.constant 0 : index
    %c0_58 = arith.constant 0 : index
    %106 = vector.load %arg3[%105, %c0_57, %c0_58] : memref<16x1x128xf32, #tpu.memory_space<vmem>>, vector<1x1x128xf32>
    %107 = vector.shape_cast %106 : vector<1x1x128xf32> to vector<1x128xf32>
    %c7 = arith.constant 7 : index
    %c0_59 = arith.constant 0 : index
    %108 = vector.load %arg9[%c7, %c0_59] : memref<8x128xf32, #tpu.memory_space<vmem>>, vector<1x128xf32>
    tpu.vector_store %arg9[%c7, %c0_59], %107 {strides = array<i32>} : memref<8x128xf32, #tpu.memory_space<vmem>>, vector<1x128xf32>,
    %109 = arith.index_cast %104 : i32 to index
    %c0_60 = arith.constant 0 : index
    %c0_61 = arith.constant 0 : index
    %110 = vector.load %arg4[%109, %c0_60, %c0_61] : memref<24x1x128xf32, #tpu.memory_space<vmem>>, vector<1x1x128xf32>
    %111 = vector.shape_cast %110 : vector<1x1x128xf32> to vector<1x128xf32>
    %c7_62 = arith.constant 7 : index
    %c0_63 = arith.constant 0 : index
    %112 = vector.load %arg10[%c7_62, %c0_63] : memref<8x128xf32, #tpu.memory_space<vmem>>, vector<1x128xf32>
    tpu.vector_store %arg10[%c7_62, %c0_63], %111 {strides = array<i32>} : memref<8x128xf32, #tpu.memory_space<vmem>>, vector<1x128xf32>,
    %c0_64 = arith.constant 0 : index
    %c0_65 = arith.constant 0 : index
    %113 = vector.load %arg9[%c0_64, %c0_65] : memref<8x128xf32, #tpu.memory_space<vmem>>, vector<8x128xf32>
    %c0_66 = arith.constant 0 : index
    %c0_67 = arith.constant 0 : index
    %114 = vector.load %arg5[%c0_66, %c0_67] : memref<1x128xf32, #tpu.memory_space<vmem>>, vector<1x128xf32>
    %115 = vector.broadcast %114 : vector<1x128xf32> to vector<8x128xf32>
    %116 = arith.mulf %113, %115 : vector<8x128xf32>
    %c0_68 = arith.constant 0 : index
    %c0_69 = arith.constant 0 : index
    %117 = vector.load %arg10[%c0_68, %c0_69] : memref<8x128xf32, #tpu.memory_space<vmem>>, vector<8x128xf32>
    %c0_70 = arith.constant 0 : index
    %c0_71 = arith.constant 0 : index
    %118 = vector.load %arg6[%c0_70, %c0_71] : memref<1x128xf32, #tpu.memory_space<vmem>>, vector<1x128xf32>
    %119 = vector.broadcast %118 : vector<1x128xf32> to vector<8x128xf32>
    %120 = arith.mulf %117, %119 : vector<8x128xf32>
    %121 = arith.addf %116, %120 : vector<8x128xf32>
    %cst = arith.constant dense<0.000000e+00> : vector<8xf32>
    %122 = vector.multi_reduction <add>, %121, %cst [1] : vector<8x128xf32> to vector<8xf32>
    %123 = vector.shape_cast %122 : vector<8xf32> to vector<8x1xf32>
    %c0_72 = arith.constant 0 : index
    %124 = memref.load %arg7[%c0_72] : memref<1xf32, #tpu.memory_space<smem>>
    %125 = vector.broadcast %124 : f32 to vector<8x1xf32>
    %126 = arith.addf %123, %125 : vector<8x1xf32>
    %127 = tpu.iota {dimensions = array<i32: 0>} : vector<8x8xi32>
    %128 = tpu.iota {dimensions = array<i32: 1>} : vector<8x8xi32>
    %129 = arith.cmpi eq, %127, %128 : vector<8x8xi32>
    %130 = vector.shape_cast %126 : vector<8x1xf32> to vector<8x1xf32>
    %131 = vector.broadcast %130 : vector<8x1xf32> to vector<8x8xf32>
    %cst_73 = arith.constant 0.000000e+00 : f32
    %132 = vector.broadcast %cst_73 : f32 to vector<8x8xf32>
    %133 = arith.select %129, %131, %132 : vector<8x8xi1>, vector<8x8xf32>
    %cst_74 = arith.constant dense<0.000000e+00> : vector<8xf32>
    %134 = vector.multi_reduction <add>, %133, %cst_74 [0] : vector<8x8xf32> to vector<8xf32>
    %135 = vector.shape_cast %134 : vector<8xf32> to vector<1x8xf32>
    %c0_75 = arith.constant 0 : index
    %c0_76 = arith.constant 0 : index
    %136 = vector.load %arg8[%c0_75, %c0_76] : memref<1x8xf32, #tpu.memory_space<vmem>>, vector<1x8xf32>
    tpu.vector_store %arg8[%c0_75, %c0_76], %135 {strides = array<i32>} : memref<1x8xf32, #tpu.memory_space<vmem>>, vector<1x8xf32>,
    return
  }
  func.func @transform_0(%arg0: i32) -> i32 {
    %c0_i32 = arith.constant 0 : i32
    %c0_i32_0 = arith.constant 0 : i32
    return %c0_i32 : i32
  }
  func.func @transform_1(%arg0: i32) -> i32 {
    %c0_i32 = arith.constant 0 : i32
    %c0_i32_0 = arith.constant 0 : i32
    return %c0_i32 : i32
  }
  func.func @transform_2(%arg0: i32) -> (i32, i32, i32) {
    %c0_i32 = arith.constant 0 : i32
    %c0_i32_0 = arith.constant 0 : i32
    %c0_i32_1 = arith.constant 0 : i32
    %c0_i32_2 = arith.constant 0 : i32
    return %c0_i32, %c0_i32_0, %c0_i32_1 : i32, i32, i32
  }
  func.func @transform_3(%arg0: i32) -> (i32, i32, i32) {
    %c0_i32 = arith.constant 0 : i32
    %c0_i32_0 = arith.constant 0 : i32
    %c0_i32_1 = arith.constant 0 : i32
    %c0_i32_2 = arith.constant 0 : i32
    return %c0_i32, %c0_i32_0, %c0_i32_1 : i32, i32, i32
  }
  func.func @transform_4(%arg0: i32) -> (i32, i32) {
    %c0_i32 = arith.constant 0 : i32
    %c0_i32_0 = arith.constant 0 : i32
    %c0_i32_1 = arith.constant 0 : i32
    return %c0_i32, %c0_i32_0 : i32, i32
  }
  func.func @transform_5(%arg0: i32) -> (i32, i32) {
    %c0_i32 = arith.constant 0 : i32
    %c0_i32_0 = arith.constant 0 : i32
    %c0_i32_1 = arith.constant 0 : i32
    return %c0_i32, %c0_i32_0 : i32, i32
  }
  func.func @transform_6(%arg0: i32) -> i32 {
    %c0_i32 = arith.constant 0 : i32
    %c0_i32_0 = arith.constant 0 : i32
    return %c0_i32 : i32
  }
  func.func @transform_7(%arg0: i32) -> (i32, i32) {
    %c0_i32 = arith.constant 0 : i32
    %c0_i32_0 = arith.constant 0 : i32
    return %c0_i32, %arg0 : i32, i32
  }
}

</mosaic_0001>

<llo_original>
// kernel: tpu_custom_call.1
$region0: #{tpu_custom_call.1}
  #allocation0 [shape = 'u32[]', space=smem, size = 0x4, offset = 0x4, fixed_abs, tag = 'smem constant byte address 0x4 - core index']
  #allocation1 [shape = 'u32[144,128]{1,0:T(1,128)}', space=vmem, size = 0x12000, scoped, tag = 'internal scratch']
  #allocation2 [shape = 'f32[8,128]{1,0:T(8,128)}', space=vmem, size = 0x1000, scoped, tag = 'scratch operand']
  #allocation3 [shape = 'f32[8,128]{1,0:T(8,128)}', space=vmem, size = 0x1000, scoped, tag = 'scratch operand']
  #allocation4 [shape = 'f32[1]{0:T(128)S(6)}', space=smem, size = 0x200, scoped, tag = 'scoped memory for tpu_custom_call.1']
  %s0 = inlined_call_operand.vmem [shape: s32[8], index: 0, kind: input, shape index: {}]
  %s1 = inlined_call_operand.vmem [shape: s32[8], index: 1, kind: input, shape index: {}]
  %s2 = inlined_call_operand.hbm [shape: f32[16,1,128], index: 2, kind: input, shape index: {}]
  %s3 = inlined_call_operand.hbm [shape: f32[24,1,128], index: 3, kind: input, shape index: {}]
  %s4 = inlined_call_operand.vmem [shape: f32[1,128], index: 4, kind: input, shape index: {}]
  %s5 = inlined_call_operand.vmem [shape: f32[1,128], index: 5, kind: input, shape index: {}]
  %s6 = inlined_call_operand.<no memory space> [shape: f32[1], index: 6, kind: input, shape index: {}]
  %s7 = inlined_call_operand.hbm [shape: f32[1,8], index: 7, kind: output, shape index: {}]
  %s8 = sld [smem:[#allocation0]]
  $region54: #{tpu_custom_call.1} parent=0
    _
  %s10 = ssub.s32 1, %s8
  %s11 = scalar_select 0, %s10, %s8
  %12 = sst [smem:[#allocation4]] %s6
  $region1: #{tpu_custom_call.1} parent=0
    #allocation5 [shape = 'u8[512]{0}', space=smem, size = 0x200, scoped, tag = 'input window, operand 0, single buffered']
    #allocation6 [shape = 's32[1]{0}', space=sflag, size = 0x4, scoped, tag = 'scoped memory for tpu_custom_call.1']
    #allocation7 [shape = 's32[1]{0}', space=sflag, size = 0x4, scoped, tag = 'scoped memory for tpu_custom_call.1']
    #allocation8 [shape = 's32[1]{0}', space=sflag, size = 0x4, scoped, tag = 'scoped memory for tpu_custom_call.1']
    #allocation9 [shape = 'u8[512]{0}', space=smem, size = 0x200, scoped, tag = 'input window, operand 1, single buffered']
    #allocation10 [shape = 's32[1]{0}', space=sflag, size = 0x4, scoped, tag = 'scoped memory for tpu_custom_call.1']
    #allocation11 [shape = 'u8[8192]{0}', space=vmem, size = 0x2000, scoped, tag = 'input window, operand 2, single buffered']
    #allocation12 [shape = 'u8[12288]{0}', space=vmem, size = 0x3000, scoped, tag = 'input window, operand 3, single buffered']
    #allocation13 [shape = 's32[1]{0}', space=sflag, size = 0x4, scoped, tag = 'scoped memory for tpu_custom_call.1']
    #allocation14 [shape = 'u8[512]{0}', space=vmem, size = 0x400, scoped, tag = 'output window, operand 0, single buffered']
    %13 = vsyncpa [#allocation8], 0
    %14 = vsyncpa [#allocation10], 0
    %15 = vsyncpa [#allocation6], 0
    %16 = vsyncpa [#allocation13], 0
    %17 = vsyncpa [#allocation7], 0
    // Predicated region
    $region2: #{tpu_custom_call.1} parent=1 // pred_check
      _
    $region3: #{tpu_custom_call.1} parent=1 // pred_check_branch
      %19 = sbr.rel (0) target = $region5
    $region4: #{tpu_custom_call.1} parent=1 // pred_region
      %s21 = ssub.s32 16, 16
      %22 = vsyncadd [#allocation8], %s21
      %s24 = sshll.u32 %s0, 4
      %s25 = int_to_ptr.vmem [resolvable:$true] %s24
      %27 = dma.vmem_to_smem %s25, 16, [#allocation5], [#allocation8]
    $region5: #{tpu_custom_call.1} parent=1 // pred_fallthru
      _
    // Predicated region
    $region6: #{tpu_custom_call.1} parent=1 // pred_check
      _
    $region7: #{tpu_custom_call.1} parent=1 // pred_check_branch
      %29 = sbr.rel (0) target = $region9
    $region8: #{tpu_custom_call.1} parent=1 // pred_region
      %s31 = ssub.s32 16, 16
      %32 = vsyncadd [#allocation10], %s31
      %s34 = sshll.u32 %s1, 4
      %s35 = int_to_ptr.vmem [resolvable:$true] %s34
      %37 = dma.vmem_to_smem %s35, 16, [#allocation9], [#allocation10]
    $region9: #{tpu_custom_call.1} parent=1 // pred_fallthru
      _
    // Predicated region
    $region10: #{tpu_custom_call.1} parent=1 // pred_check
      _
    $region11: #{tpu_custom_call.1} parent=1 // pred_check_branch
      %39 = sbr.rel (0) target = $region13
    $region12: #{tpu_custom_call.1} parent=1 // pred_region
      %s41 = ssub.s32 256, 256
      %42 = vsyncadd [#allocation6], %s41
      %s43 = sshll.u32 [#allocation11], 4
      %s44 = int_to_ptr.vmem [resolvable:$true] %s43
      %49 = dma.hbm_to_vmem [thread:$0]  %s2, 256, %s44, [#allocation6], 16, 16, 1
    $region13: #{tpu_custom_call.1} parent=1 // pred_fallthru
      _
    // Predicated region
    $region14: #{tpu_custom_call.1} parent=1 // pred_check
      _
    $region15: #{tpu_custom_call.1} parent=1 // pred_check_branch
      %51 = sbr.rel (0) target = $region17
    $region16: #{tpu_custom_call.1} parent=1 // pred_region
      %s53 = ssub.s32 384, 384
      %54 = vsyncadd [#allocation13], %s53
      %s55 = sshll.u32 [#allocation12], 4
      %s56 = int_to_ptr.vmem [resolvable:$true] %s55
      %61 = dma.hbm_to_vmem [thread:$0]  %s3, 384, %s56, [#allocation13], 16, 16, 1
    $region17: #{tpu_custom_call.1} parent=1 // pred_fallthru
      _
    // Predicated region
    $region18: #{tpu_custom_call.1} parent=1 // pred_check
      _
    $region19: #{tpu_custom_call.1} parent=1 // pred_check_branch
      %63 = sbr.rel (0) target = $region21
    $region20: #{tpu_custom_call.1} parent=1 // pred_region
      _
    $region21: #{tpu_custom_call.1} parent=1 // pred_fallthru
      _
    // Predicated region
    $region22: #{tpu_custom_call.1} parent=1 // pred_check
      _
    $region23: #{tpu_custom_call.1} parent=1 // pred_check_branch
      %65 = sbr.rel (0) target = $region25
    $region24: #{tpu_custom_call.1} parent=1 // pred_region
      _
    $region25: #{tpu_custom_call.1} parent=1 // pred_fallthru
      _
    // Predicated region
    $region26: #{tpu_custom_call.1} parent=1 // pred_check
      _
    $region27: #{tpu_custom_call.1} parent=1 // pred_check_branch
      %67 = sbr.rel (0) target = $region29
    $region28: #{tpu_custom_call.1} parent=1 // pred_region
      _
    $region29: #{tpu_custom_call.1} parent=1 // pred_fallthru
      _
    // Predicated region
    $region30: #{tpu_custom_call.1} parent=1 // pred_check
      _
    $region31: #{tpu_custom_call.1} parent=1 // pred_check_branch
      %69 = sbr.rel (0) target = $region33
    $region32: #{tpu_custom_call.1} parent=1 // pred_region
      %70 = dma.done [#allocation8], 16
    $region33: #{tpu_custom_call.1} parent=1 // pred_fallthru
      _
    // Predicated region
    $region34: #{tpu_custom_call.1} parent=1 // pred_check
      _
    $region35: #{tpu_custom_call.1} parent=1 // pred_check_branch
      %72 = sbr.rel (0) target = $region37
    $region36: #{tpu_custom_call.1} parent=1 // pred_region
      %73 = dma.done [#allocation10], 16
    $region37: #{tpu_custom_call.1} parent=1 // pred_fallthru
      _
    // Predicated region
    $region38: #{tpu_custom_call.1} parent=1 // pred_check
      _
    $region39: #{tpu_custom_call.1} parent=1 // pred_check_branch
      %75 = sbr.rel (0) target = $region41
    $region40: #{tpu_custom_call.1} parent=1 // pred_region
      %76 = dma.done [#allocation6], 256
    $region41: #{tpu_custom_call.1} parent=1 // pred_fallthru
      _
    // Predicated region
    $region42: #{tpu_custom_call.1} parent=1 // pred_check
      _
    $region43: #{tpu_custom_call.1} parent=1 // pred_check_branch
      %78 = sbr.rel (0) target = $region45
    $region44: #{tpu_custom_call.1} parent=1 // pred_region
      %79 = dma.done [#allocation13], 384
    $region45: #{tpu_custom_call.1} parent=1 // pred_fallthru
      _
    %80 = sfence
    %s81 = smul.u32 0, 8
    %s82 = sld [smem:[#allocation5 + %s81]]
    %s83 = sld [smem:[#allocation9 + %s81]]
    %s84 = scalar_lea.vmem [#allocation11], %s82
    %v85 = vld [vmem:[%s84] sm:$0x1]
    %86 = vst [vmem:[#allocation2] sm:$0x1] %v85
    %s87 = scalar_lea.vmem [#allocation12], %s83
    %v88 = vld [vmem:[%s87] sm:$0x1]
    %89 = vst [vmem:[#allocation3] sm:$0x1] %v88
    %s90 = sadd.s32 %s81, 1
    %s91 = sld [smem:[#allocation5 + %s90]]
    %s92 = sld [smem:[#allocation9 + %s90]]
    %s93 = scalar_lea.vmem [#allocation11], %s91
    %v94 = vld [vmem:[%s93] sm:$0x1]
    %95 = vst [vmem:[#allocation2 + $0x1] sm:$0x1] %v94
    %s96 = scalar_lea.vmem [#allocation12], %s92
    %v97 = vld [vmem:[%s96] sm:$0x1]
    %98 = vst [vmem:[#allocation3 + $0x1] sm:$0x1] %v97
    %s99 = sadd.s32 %s81, 2
    %s100 = sld [smem:[#allocation5 + %s99]]
    %s101 = sld [smem:[#allocation9 + %s99]]
    %s102 = scalar_lea.vmem [#allocation11], %s100
    %v103 = vld [vmem:[%s102] sm:$0x1]
    %104 = vst [vmem:[#allocation2 + $0x2] sm:$0x1] %v103
    %s105 = scalar_lea.vmem [#allocation12], %s101
    %v106 = vld [vmem:[%s105] sm:$0x1]
    %107 = vst [vmem:[#allocation3 + $0x2] sm:$0x1] %v106
    %s108 = sadd.s32 %s81, 3
    %s109 = sld [smem:[#allocation5 + %s108]]
    %s110 = sld [smem:[#allocation9 + %s108]]
    %s111 = scalar_lea.vmem [#allocation11], %s109
    %v112 = vld [vmem:[%s111] sm:$0x1]
    %113 = vst [vmem:[#allocation2 + $0x3] sm:$0x1] %v112
    %s114 = scalar_lea.vmem [#allocation12], %s110
    %v115 = vld [vmem:[%s114] sm:$0x1]
    %116 = vst [vmem:[#allocation3 + $0x3] sm:$0x1] %v115
    %s117 = sadd.s32 %s81, 4
    %s118 = sld [smem:[#allocation5 + %s117]]
    %s119 = sld [smem:[#allocation9 + %s117]]
    %s120 = scalar_lea.vmem [#allocation11], %s118
    %v121 = vld [vmem:[%s120] sm:$0x1]
    %122 = vst [vmem:[#allocation2 + $0x4] sm:$0x1] %v121
    %s123 = scalar_lea.vmem [#allocation12], %s119
    %v124 = vld [vmem:[%s123] sm:$0x1]
    %125 = vst [vmem:[#allocation3 + $0x4] sm:$0x1] %v124
    %s126 = sadd.s32 %s81, 5
    %s127 = sld [smem:[#allocation5 + %s126]]
    %s128 = sld [smem:[#allocation9 + %s126]]
    %s129 = scalar_lea.vmem [#allocation11], %s127
    %v130 = vld [vmem:[%s129] sm:$0x1]
    %131 = vst [vmem:[#allocation2 + $0x5] sm:$0x1] %v130
    %s132 = scalar_lea.vmem [#allocation12], %s128
    %v133 = vld [vmem:[%s132] sm:$0x1]
    %134 = vst [vmem:[#allocation3 + $0x5] sm:$0x1] %v133
    %s135 = sadd.s32 %s81, 6
    %s136 = sld [smem:[#allocation5 + %s135]]
    %s137 = sld [smem:[#allocation9 + %s135]]
    %s138 = scalar_lea.vmem [#allocation11], %s136
    %v139 = vld [vmem:[%s138] sm:$0x1]
    %140 = vst [vmem:[#allocation2 + $0x6] sm:$0x1] %v139
    %s141 = scalar_lea.vmem [#allocation12], %s137
    %v142 = vld [vmem:[%s141] sm:$0x1]
    %143 = vst [vmem:[#allocation3 + $0x6] sm:$0x1] %v142
    %s144 = sadd.s32 %s81, 7
    %s145 = sld [smem:[#allocation5 + %s144]]
    %s146 = sld [smem:[#allocation9 + %s144]]
    %s147 = scalar_lea.vmem [#allocation11], %s145
    %v148 = vld [vmem:[%s147] sm:$0x1]
    %149 = vst [vmem:[#allocation2 + $0x7] sm:$0x1] %v148
    %s150 = scalar_lea.vmem [#allocation12], %s146
    %v151 = vld [vmem:[%s150] sm:$0x1]
    %152 = vst [vmem:[#allocation3 + $0x7] sm:$0x1] %v151
    %v153 = vld [vmem:[#allocation2] sm:$0xff]
    %v154 = vld [vmem:[%s4] sm:$0x1]
    %v156 = vlaneseq
    %v157 = vshrl.u32 %v156, 7
    %v158 = vsub.s32 0, %v157
    %v159 = vrot.slane %v154, %v158
    %v161 = vmul.f32 %v153, %v159
    %v162 = vld [vmem:[#allocation3] sm:$0xff]
    %v163 = vld [vmem:[%s5] sm:$0x1]
    %v165 = vlaneseq
    %v166 = vshrl.u32 %v165, 7
    %v167 = vsub.s32 0, %v166
    %v168 = vrot.slane %v163, %v167
    %v170 = vmul.f32 %v162, %v168
    %v171 = vadd.f32 %v161, %v170
    %172 = vadd.xlane.f32.xlu0 %v171
    %v173 = vpop.xlane.xlu0 %172
    %s174 = sld [smem:[#allocation4]]
    %v175 = vstv %s174
    %v176 = vadd.f32 %v173, %v175
    %v177 = vlaneseq
    %v178 = vshrl.u32 %v177, 7
    %v179 = vlaneseq
    %v180 = vand.u32 %v179, 127
    %vm181 = vcmp.eq.s32.totalorder %v178, %v180
    %v182 = vsel %vm181, %v176, 0.0
    %vm183 = vcmask 64512
    %v184 = vsel %vm183, %v182, 0.0
    %v185 = vrot.slane %v184, 4
    %v186 = vadd.f32 %v184, %v185
    %v187 = vrot.slane %v186, 2
    %v188 = vadd.f32 %v186, %v187
    %v189 = vrot.slane %v188, 1
    %v190 = vadd.f32 %v188, %v189
    %vm191 = vcmask 57344
    %192 = vst.msk [vmem:[#allocation14] sm:$0x1] %vm191, %v190
    // Predicated region
    $region46: #{tpu_custom_call.1} parent=1 // pred_check
      _
    $region47: #{tpu_custom_call.1} parent=1 // pred_check_branch
      %194 = sbr.rel (0) target = $region49
    $region48: #{tpu_custom_call.1} parent=1 // pred_region
      %s196 = ssub.s32 16, 16
      %197 = vsyncadd [#allocation7], %s196
      %s199 = sshll.u32 [#allocation14], 4
      %s200 = int_to_ptr.vmem [resolvable:$true] %s199
      %202 = dma.vmem_to_hbm [thread:$0]  %s200, 16, %s7, [#allocation7]
    $region49: #{tpu_custom_call.1} parent=1 // pred_fallthru
      _
    // Predicated region
    $region50: #{tpu_custom_call.1} parent=1 // pred_check
      _
    $region51: #{tpu_custom_call.1} parent=1 // pred_check_branch
      %204 = sbr.rel (0) target = $region53
    $region52: #{tpu_custom_call.1} parent=1 // pred_region
      %205 = dma.done [#allocation7], 16
    $region53: #{tpu_custom_call.1} parent=1 // pred_fallthru
      _
    %206 = vsyncpa [#allocation6], 1
    %207 = vsyncpa [#allocation13], 1
    %208 = vsyncpa [#allocation7], 1
    %209 = vsyncpa [#allocation8], 1
    %210 = vsyncpa [#allocation10], 1

</llo_original>
